<compile_context>
chip_gen: v7x
topology: tpu7x:2x2x1
jax: 0.10.0
libtpu: 0.0.40
codegen_flags: <defaults>
</compile_context>

<pallas_src>
import jax
import jax.numpy as jnp
from jax.experimental import pallas as pl
from jax.experimental.pallas import tpu as pltpu

BN_EPS = 1e-5


def conv_stats_kernel(x_ref, w_ref, conv_ref, stats_ref):
    """One row tile of the conv + this tile's partial BN statistics.

    x_ref     : (TM, K)         bf16  im2row activation tile, K = pad128(3*(W+2)*Cin)
    w_ref     : (K, W*Cout)     bf16  block-Toeplitz conv weights (kh,kw,Cin folded in K)
    conv_ref  : (TM, W*Cout)    f32   conv output tile (lane-dense)
    stats_ref : (1, 2, W*Cout)  f32   [row-sum; row-sum-of-squares] for this tile
    """
    acc = jnp.dot(x_ref[...], w_ref[...], preferred_element_type=jnp.float32)
    conv_ref[...] = acc
    s1 = jnp.sum(acc, axis=0, keepdims=True)
    s2 = jnp.sum(acc * acc, axis=0, keepdims=True)
    stats_ref[...] = jnp.concatenate([s1, s2], axis=0).reshape(stats_ref.shape)


def norm_pool_kernel(conv_ref, ss_ref, o_ref):
    """BatchNorm affine + PReLU + MaxPool((2,1)) for one row tile.

    conv_ref : (TM, W*Cout)     f32
    ss_ref   : (3, W*Cout)      f32   rows = [scale, shift, alpha] in lane layout
    o_ref    : (TM//2, W*Cout)  f32   lane-dense output
    """
    half = o_ref.shape[0]
    scale = ss_ref[0:1, :]
    shift = ss_ref[1:2, :]
    alpha = ss_ref[2:3, :]
    # Sublane-strided loads pick even/odd conv rows directly (no value relayout).
    y0 = conv_ref[pl.ds(0, half, stride=2), :] * scale + shift
    y1 = conv_ref[pl.ds(1, half, stride=2), :] * scale + shift
    y0 = jnp.where(y0 > 0, y0, alpha * y0)
    y1 = jnp.where(y1 > 0, y1, alpha * y1)
    o_ref[...] = jnp.maximum(y0, y1).astype(o_ref.dtype)


def _vmem_limit(block_bytes):
    """Scoped-VMEM budget: pipelined block bytes (already x2 buffered) + headroom,
    clamped to [32 MiB, 48 MiB] (safe on v5e/v6e/v7x)."""
    return int(min(max(block_bytes + (4 << 20), 32 << 20), 48 << 20))


def conv_block(x_nchw, w_oihw, bias, gamma, beta, alpha, *, tile_rows=128):
    """x_nchw: (N, Cin, H, W) f32.  Returns (N, Cout, H//2, W) f32 (ConvBlock forward).

    The Conv2d bias is dropped on purpose: training-mode BatchNorm subtracts the
    batch mean, which cancels a per-channel constant exactly.
    # TODO(synk): if this block is ever run with eval-mode BN (running stats), the
    # bias no longer cancels and must be added back; running_mean/var updates are
    # also not produced here (forward activation only).
    """
    del bias
    N, Cin, H, W = x_nchw.shape
    Cout = w_oihw.shape[0]
    assert H % 2 == 0, "MaxPool((2,1)) row-pair tiling assumes even H"
    wpad = W + 2
    wcout = W * Cout
    k_raw = 3 * wpad * Cin
    K = ((k_raw + 127) // 128) * 128          # 216 -> 256: matches v6e/v7x MXU depth
    m_total = N * H
    if m_total % tile_rows != 0 or tile_rows % 2 != 0:
        tile_rows = m_total                    # fall back to a single tile
    num_tiles = m_total // tile_rows

    # ---- activations: NCHW -> padded NHWC -> im2row slab (kh folded into K), bf16
    x_nhwc = jnp.transpose(x_nchw, (0, 2, 3, 1)).astype(jnp.float32)
    x_p = jnp.pad(x_nhwc, ((0, 0), (1, 1), (1, 1), (0, 0)))               # (N,H+2,W+2,Cin)
    x_rows = jnp.stack([x_p[:, kh:kh + H] for kh in range(3)], axis=2)    # (N,H,3,W+2,Cin)
    x_slab = x_rows.reshape(m_total, k_raw)
    x_slab = jnp.pad(x_slab, ((0, 0), (0, K - k_raw))).astype(jnp.bfloat16)

    # ---- conv weights -> block-Toeplitz matrix (kh, kw, Cin folded into K), bf16
    # TODO(synk): at production W, tile the W*Cout output axis and materialize only
    # the (Wtile+2)*Cin Toeplitz band per tile (the full matrix is O(W) redundant).
    w_hwio = jnp.transpose(w_oihw, (2, 3, 1, 0)).astype(jnp.float32)      # (3,3,Cin,Cout)
    wt = jnp.zeros((3, wpad, Cin, W, Cout), jnp.float32)
    for kw in range(3):
        shift = jnp.eye(wpad, W, k=-kw, dtype=jnp.float32)   # [wp, w] = 1 iff wp == w + kw
        wt = wt + shift[None, :, None, :, None] * w_hwio[:, kw][:, None, :, None, :]
    wk = wt.reshape(k_raw, wcout)
    wk = jnp.pad(wk, ((0, K - k_raw), (0, 0))).astype(jnp.bfloat16)

    # ---- pass 1: conv + per-tile partial BN statistics (grid fully parallel) ------
    bytes_a = 2 * (tile_rows * K * 2 + K * wcout * 2
                   + tile_rows * wcout * 4 + 2 * wcout * 4)
    conv_out, part_stats = pl.pallas_call(
        conv_stats_kernel,
        out_shape=(jax.ShapeDtypeStruct((m_total, wcout), jnp.float32),
                   jax.ShapeDtypeStruct((num_tiles, 2, wcout), jnp.float32)),
        grid=(num_tiles,),
        in_specs=[pl.BlockSpec((tile_rows, K), lambda i: (i, 0)),
                  pl.BlockSpec((K, wcout), lambda i: (0, 0))],
        out_specs=(pl.BlockSpec((tile_rows, wcout), lambda i: (i, 0)),
                   pl.BlockSpec((1, 2, wcout), lambda i: (i, 0, 0))),
        compiler_params=pltpu.CompilerParams(
            dimension_semantics=("parallel",),
            vmem_limit_bytes=_vmem_limit(bytes_a)),
    )(x_slab, wk)

    # ---- fold partial stats -> per-channel scale/shift (tiny O(Cout) wrapper math)
    # TODO(synk): E[x^2]-E[x]^2 in f32 can cancel for large-|mean| activations at
    # production N*H*W; use a centered second pass / compensated sums there.
    stats = jnp.sum(part_stats, axis=0)                     # (2, W*Cout)
    count = float(N * H * W)
    ch_sum = stats[0].reshape(W, Cout).sum(axis=0)
    ch_sq = stats[1].reshape(W, Cout).sum(axis=0)
    mean = ch_sum / count
    var = ch_sq / count - mean * mean                       # biased variance (PyTorch BN)
    inv_std = jax.lax.rsqrt(var + BN_EPS)
    scale_c = gamma.astype(jnp.float32) * inv_std
    shift_c = beta.astype(jnp.float32) - mean * scale_c
    alpha_f = jnp.asarray(alpha, jnp.float32).reshape(())
    ss = jnp.stack([jnp.tile(scale_c, W),
                    jnp.tile(shift_c, W),
                    jnp.full((wcout,), alpha_f, jnp.float32)], axis=0)   # (3, W*Cout)

    # ---- pass 2: normalize + PReLU + MaxPool((2,1)), lane-dense stores ------------
    bytes_b = 2 * (tile_rows * wcout * 4 + 3 * wcout * 4
                   + (tile_rows // 2) * wcout * 4)
    pooled = pl.pallas_call(
        norm_pool_kernel,
        out_shape=jax.ShapeDtypeStruct((m_total // 2, wcout), jnp.float32),
        grid=(num_tiles,),
        in_specs=[pl.BlockSpec((tile_rows, wcout), lambda i: (i, 0)),
                  pl.BlockSpec((3, wcout), lambda i: (0, 0))],
        out_specs=pl.BlockSpec((tile_rows // 2, wcout), lambda i: (i, 0)),
        compiler_params=pltpu.CompilerParams(
            dimension_semantics=("parallel",),
            vmem_limit_bytes=_vmem_limit(bytes_b)),
    )(conv_out, ss)

    # lane-dense (N*H//2, W*Cout) -> NCHW (N, Cout, H//2, W) to match PyTorch.
    out = pooled.reshape(N, H // 2, W, Cout)
    return jnp.transpose(out, (0, 3, 1, 2))


def reference(x_nchw, w_oihw, bias, gamma, beta, alpha, conv_dtype=jnp.float32):
    """Pure-JAX mirror of the PyTorch forward (training-mode BN, incl. conv bias).
    `conv_dtype` selects the conv operand precision (bf16 matches the kernel's MXU
    inputs; accumulation is f32 either way)."""
    y = jax.lax.conv_general_dilated(
        x_nchw.astype(conv_dtype), w_oihw.astype(conv_dtype),
        window_strides=(1, 1), padding=((1, 1), (1, 1)),
        dimension_numbers=("NCHW", "OIHW", "NCHW"),
        preferred_element_type=jnp.float32)
    y = y + bias.reshape(1, -1, 1, 1)
    mean = jnp.mean(y, axis=(0, 2, 3), keepdims=True)
    var = jnp.mean((y - mean) ** 2, axis=(0, 2, 3), keepdims=True)
    y = (y - mean) * jax.lax.rsqrt(var + BN_EPS)
    y = y * gamma.reshape(1, -1, 1, 1) + beta.reshape(1, -1, 1, 1)
    y = jnp.where(y > 0, y, alpha * y)
    N, C, H, W = y.shape
    return y.reshape(N, C, H // 2, 2, W).max(axis=3)        # MaxPool2d((2, 1))


if __name__ == "__main__":
    key = jax.random.PRNGKey(0)
    k_x, k_w, k_b, k_g, k_be = jax.random.split(key, 5)

    N, Cin, Cout, H, W = 2, 4, 8, 16, 16

    x = jax.random.normal(k_x, (N, Cin, H, W), dtype=jnp.float32)
    w = jax.random.normal(k_w, (Cout, Cin, 3, 3), dtype=jnp.float32) * 0.1
    bias = jax.random.normal(k_b, (Cout,), dtype=jnp.float32) * 0.1
    gamma = 1.0 + 0.1 * jax.random.normal(k_g, (Cout,), dtype=jnp.float32)
    beta = 0.1 * jax.random.normal(k_be, (Cout,), dtype=jnp.float32)
    alpha = jnp.array(0.25, jnp.float32)                    # PReLU default init

    # tile_rows=16 -> a 2-step grid even at this toy size (exercises the pipeline).
    out = conv_block(x, w, bias, gamma, beta, alpha, tile_rows=16)
    out = jax.block_until_ready(out)
    assert out.shape == (N, Cout, H // 2, W), out.shape

    # Tight check vs a reference whose conv operands are also bf16 (same MXU precision).
    ref_bf16 = reference(x, w, bias, gamma, beta, alpha, conv_dtype=jnp.bfloat16)
    assert jnp.allclose(out, ref_bf16, rtol=2e-3, atol=2e-3), \
        float(jnp.abs(out - ref_bf16).max())
    # Loose sanity check vs the pure-f32 reference (bounds bf16 operand rounding).
    ref_f32 = reference(x, w, bias, gamma, beta, alpha, conv_dtype=jnp.float32)
    assert jnp.allclose(out, ref_f32, rtol=5e-2, atol=5e-2), \
        float(jnp.abs(out - ref_f32).max())

    print("KERNEL_OK")
</pallas_src>

<mosaic_0001>
module attributes {stable_mosaic.version = 11 : i64} {
  func.func @conv_stats_kernel(%arg0: i32, %arg1: memref<16x256xbf16, #tpu.memory_space<vmem>>, %arg2: memref<256x128xbf16, #tpu.memory_space<vmem>>, %arg3: memref<16x128xf32, #tpu.memory_space<vmem>>, %arg4: memref<1x2x128xf32, #tpu.memory_space<vmem>>) attributes {dimension_semantics = [#tpu.dimension_semantics<parallel>], iteration_bounds = array<i64: 2>, scalar_prefetch = 0 : i64, scratch_operands = 0 : i64, tpu.core_type = #tpu.core_type<tc>, window_params = [{transform_indices = @transform_0, window_bounds = array<i64: 16, 256>}, {pipeline_mode = #tpu.pipeline_mode<synchronous>, transform_indices = @transform_1, window_bounds = array<i64: 256, 128>}, {transform_indices = @transform_2, window_bounds = array<i64: 16, 128>}, {transform_indices = @transform_3, window_bounds = array<i64: 1, 2, 128>}]} {
    %c0 = arith.constant 0 : index
    %c0_0 = arith.constant 0 : index
    %0 = vector.load %arg1[%c0, %c0_0] : memref<16x256xbf16, #tpu.memory_space<vmem>>, vector<16x256xbf16>
    %c0_1 = arith.constant 0 : index
    %c0_2 = arith.constant 0 : index
    %1 = vector.load %arg2[%c0_1, %c0_2] : memref<256x128xbf16, #tpu.memory_space<vmem>>, vector<256x128xbf16>
    %cst = arith.constant dense<0.000000e+00> : vector<16x128xf32>
    %2 = tpu.matmul %0, %1, %cst {dimension_numbers = #tpu.dot_dimension_numbers<[1], [0], [0], [1], [0, 0, 1, 1], [], []>} : vector<16x256xbf16>, vector<256x128xbf16>, vector<16x128xf32> -> vector<16x128xf32>
    %c0_3 = arith.constant 0 : index
    %c0_4 = arith.constant 0 : index
    %3 = vector.load %arg3[%c0_3, %c0_4] : memref<16x128xf32, #tpu.memory_space<vmem>>, vector<16x128xf32>
    tpu.vector_store %arg3[%c0_3, %c0_4], %2 {strides = array<i32>} : memref<16x128xf32, #tpu.memory_space<vmem>>, vector<16x128xf32>,
    %cst_5 = arith.constant dense<0.000000e+00> : vector<128xf32>
    %4 = vector.multi_reduction <add>, %2, %cst_5 [0] : vector<16x128xf32> to vector<128xf32>
    %5 = vector.shape_cast %4 : vector<128xf32> to vector<1x128xf32>
    %6 = arith.mulf %2, %2 : vector<16x128xf32>
    %cst_6 = arith.constant dense<0.000000e+00> : vector<128xf32>
    %7 = vector.multi_reduction <add>, %6, %cst_6 [0] : vector<16x128xf32> to vector<128xf32>
    %8 = vector.shape_cast %7 : vector<128xf32> to vector<1x128xf32>
    %9 = tpu.concatenate %5, %8 in 0 : vector<1x128xf32>, vector<1x128xf32> -> vector<2x128xf32>
    %10 = vector.shape_cast %9 : vector<2x128xf32> to vector<1x2x128xf32>
    %c0_7 = arith.constant 0 : index
    %c0_8 = arith.constant 0 : index
    %c0_9 = arith.constant 0 : index
    %11 = vector.load %arg4[%c0_7, %c0_8, %c0_9] : memref<1x2x128xf32, #tpu.memory_space<vmem>>, vector<1x2x128xf32>
    tpu.vector_store %arg4[%c0_7, %c0_8, %c0_9], %10 {strides = array<i32>} : memref<1x2x128xf32, #tpu.memory_space<vmem>>, vector<1x2x128xf32>,
    return
  }
  func.func @transform_0(%arg0: i32) -> (i32, i32) {
    %c0_i32 = arith.constant 0 : i32
    %c0_i32_0 = arith.constant 0 : i32
    return %arg0, %c0_i32 : i32, i32
  }
  func.func @transform_1(%arg0: i32) -> (i32, i32) {
    %c0_i32 = arith.constant 0 : i32
    %c0_i32_0 = arith.constant 0 : i32
    %c0_i32_1 = arith.constant 0 : i32
    return %c0_i32, %c0_i32_0 : i32, i32
  }
  func.func @transform_2(%arg0: i32) -> (i32, i32) {
    %c0_i32 = arith.constant 0 : i32
    %c0_i32_0 = arith.constant 0 : i32
    return %arg0, %c0_i32 : i32, i32
  }
  func.func @transform_3(%arg0: i32) -> (i32, i32, i32) {
    %c0_i32 = arith.constant 0 : i32
    %c0_i32_0 = arith.constant 0 : i32
    %c0_i32_1 = arith.constant 0 : i32
    return %arg0, %c0_i32, %c0_i32_0 : i32, i32, i32
  }
}

</mosaic_0001>

<llo_original>
// kernel: tpu_custom_call.1
$region0: #{tpu_custom_call.1}
  #allocation0 [shape = 'u32[]', space=smem, size = 0x4, offset = 0x4, fixed_abs, tag = 'smem constant byte address 0x4 - core index']
  #allocation1 [shape = 'u32[144,128]{1,0:T(1,128)}', space=vmem, size = 0x12000, scoped, tag = 'internal scratch']
  %s0 = inlined_call_operand.hbm [shape: bf16[32,256], index: 0, kind: input, shape index: {}]
  %s1 = inlined_call_operand.hbm [shape: bf16[256,128], index: 1, kind: input, shape index: {}]
  %s2 = inlined_call_operand.hbm [shape: f32[32,128], index: 2, kind: output, shape index: {0}]
  %s3 = inlined_call_operand.hbm [shape: f32[2,2,128], index: 3, kind: output, shape index: {1}]
  %4 = xla_tuple %s2, %s3
  %s5 = sld [smem:[#allocation0]]
  $region57: #{tpu_custom_call.1} parent=0
    _
  %s7 = ssub.s32 1, %s5
  %s8 = scalar_select 0, %s7, %s5
  $region1: #{tpu_custom_call.1} parent=0
    #allocation2 [shape = 'u8[16384]{0}', space=vmem, size = 0x4000, scoped, tag = 'input window, operand 0']
    #allocation3 [shape = 's32[2]{0}', space=sflag, size = 0x8, scoped, tag = 'scoped memory for tpu_custom_call.1']
    #allocation4 [shape = 's32[2]{0}', space=sflag, size = 0x8, scoped, tag = 'scoped memory for tpu_custom_call.1']
    #allocation5 [shape = 'u8[65536]{0}', space=vmem, size = 0x10000, scoped, tag = 'input window, operand 1, single buffered']
    #allocation6 [shape = 's32[1]{0}', space=sflag, size = 0x4, scoped, tag = 'scoped memory for tpu_custom_call.1']
    #allocation7 [shape = 'u8[16384]{0}', space=vmem, size = 0x4000, scoped, tag = 'output window, operand 0']
    #allocation8 [shape = 'u8[2048]{0}', space=vmem, size = 0x800, scoped, tag = 'output window, operand 1']
    #allocation9 [shape = 's32[2]{0}', space=sflag, size = 0x8, scoped, tag = 'scoped memory for tpu_custom_call.1']
    %9 = vsyncpa [#allocation3], 0
    %s10 = scalar_lea.sflag [#allocation3], 1
    %11 = vsyncpa %s10, 0
    %12 = vsyncpa [#allocation6], 0
    %13 = vsyncpa [#allocation4], 0
    %s14 = scalar_lea.sflag [#allocation4], 1
    %15 = vsyncpa %s14, 0
    %16 = vsyncpa [#allocation9], 0
    %s17 = scalar_lea.sflag [#allocation9], 1
    %18 = vsyncpa %s17, 0
    loop: start=0, step=1, limit=4
    $region2: #{tpu_custom_call.1} parent=1 // loop_pre_header
      _
    $region3: #{tpu_custom_call.1} parent=1 // loop_header
      %s20 = sphi 0, %s24
      %p21 = scmp.ge.s32.totalorder %s20, 4
      %s30 = sphi 0, %s32
      %s33 = sphi 0, %s30
      %s34 = sphi 0, %s33
      %s50 = sphi 0, %s34
      %s54 = sphi 0, %s54
      %s56 = sphi 0, %s54
      %s57 = sphi 0, %s56
      %s71 = sphi 0, %s57
      %s77 = sphi 0, %s79
      %s80 = sphi 0, %s77
      %s81 = sphi 0, %s80
      %s97 = sphi 0, %s81
      %s103 = sphi 0, %s105
      %s106 = sphi 0, %s103
      %s107 = sphi 0, %s106
      %s123 = sphi 0, %s107
    $region4: #{tpu_custom_call.1} parent=1 // loop_header_branch
      %23 = sbr.rel (%p21) target = $region8
    $region5: #{tpu_custom_call.1} parent=1 // loop_body
      %s25 = ssub.s32 %s20, 1
      %s26 = ssub.s32 %s20, 2
      %s27 = sadd.s32 %s20, 1
      %s28 = ssub.s32 %s20, %s27
      %p29 = scmp.eq.s32.totalorder %s28, 0
      %s31 = sadd.s32 %s30, 1
      %s32 = scalar_select %p29, %s30, %s31
      %p35 = pneg %p29
      %p36 = scmp.eq.s32.totalorder %s20, 1
      %p37 = por %p35, %p36
      %p38 = scmp.ne.s32.totalorder %s30, %s33
      %p39 = scmp.eq.s32.totalorder %s20, 0
      %p40 = por %p38, %p39
      %p41 = scmp.ne.s32.totalorder %s30, %s33
      %p42 = scmp.eq.s32.totalorder %s25, 1
      %p43 = por %p41, %p42
      %p44 = scmp.ne.s32.totalorder %s33, %s34
      %p45 = scmp.eq.s32.totalorder %s25, 0
      %p46 = por %p44, %p45
      %p47 = scmp.ne.s32.totalorder %s33, %s34
      %p48 = scmp.eq.s32.totalorder %s26, 1
      %p49 = por %p47, %p48
      %p51 = scmp.ne.s32.totalorder %s34, %s50
      %p52 = scmp.eq.s32.totalorder %s26, 0
      %p53 = por %p51, %p52
      %s55 = sadd.s32 %s54, 1
      %p58 = scmp.eq.s32.totalorder %s20, 1
      %p59 = scmp.ne.s32.totalorder %s54, %s56
      %p60 = scmp.eq.s32.totalorder %s20, 0
      %p61 = por %p59, %p60
      %p62 = scmp.ne.s32.totalorder %s54, %s56
      %p63 = scmp.eq.s32.totalorder %s25, 1
      %p64 = por %p62, %p63
      %p65 = scmp.ne.s32.totalorder %s56, %s57
      %p66 = scmp.eq.s32.totalorder %s25, 0
      %p67 = por %p65, %p66
      %p68 = scmp.ne.s32.totalorder %s56, %s57
      %p69 = scmp.eq.s32.totalorder %s26, 1
      %p70 = por %p68, %p69
      %p72 = scmp.ne.s32.totalorder %s57, %s71
      %p73 = scmp.eq.s32.totalorder %s26, 0
      %p74 = por %p72, %p73
      %s75 = ssub.s32 %s20, %s27
      %p76 = scmp.eq.s32.totalorder %s75, 0
      %s78 = sadd.s32 %s77, 1
      %s79 = scalar_select %p76, %s77, %s78
      %p82 = pneg %p76
      %p83 = scmp.eq.s32.totalorder %s20, 1
      %p84 = por %p82, %p83
      %p85 = scmp.ne.s32.totalorder %s77, %s80
      %p86 = scmp.eq.s32.totalorder %s20, 0
      %p87 = por %p85, %p86
      %p88 = scmp.ne.s32.totalorder %s77, %s80
      %p89 = scmp.eq.s32.totalorder %s25, 1
      %p90 = por %p88, %p89
      %p91 = scmp.ne.s32.totalorder %s80, %s81
      %p92 = scmp.eq.s32.totalorder %s25, 0
      %p93 = por %p91, %p92
      %p94 = scmp.ne.s32.totalorder %s80, %s81
      %p95 = scmp.eq.s32.totalorder %s26, 1
      %p96 = por %p94, %p95
      %p98 = scmp.ne.s32.totalorder %s81, %s97
      %p99 = scmp.eq.s32.totalorder %s26, 0
      %p100 = por %p98, %p99
      %s101 = ssub.s32 %s20, %s27
      %p102 = scmp.eq.s32.totalorder %s101, 0
      %s104 = sadd.s32 %s103, 1
      %s105 = scalar_select %p102, %s103, %s104
      %p108 = pneg %p102
      %p109 = scmp.eq.s32.totalorder %s20, 1
      %p110 = por %p108, %p109
      %p111 = scmp.ne.s32.totalorder %s103, %s106
      %p112 = scmp.eq.s32.totalorder %s20, 0
      %p113 = por %p111, %p112
      %p114 = scmp.ne.s32.totalorder %s103, %s106
      %p115 = scmp.eq.s32.totalorder %s25, 1
      %p116 = por %p114, %p115
      %p117 = scmp.ne.s32.totalorder %s106, %s107
      %p118 = scmp.eq.s32.totalorder %s25, 0
      %p119 = por %p117, %p118
      %p120 = scmp.ne.s32.totalorder %s106, %s107
      %p121 = scmp.eq.s32.totalorder %s26, 1
      %p122 = por %p120, %p121
      %p124 = scmp.ne.s32.totalorder %s107, %s123
      %p125 = scmp.eq.s32.totalorder %s26, 0
      %p126 = por %p124, %p125
      %p127 = scmp.le.s32.totalorder 1, %s20
      %p128 = scmp.lt.s32.totalorder %s20, 3
      %p129 = pnand %p127, %p128
      %p130 = pneg %p129
      // Predicated region
      $region9: #{tpu_custom_call.1} parent=5 // pred_check
        _
      $region10: #{tpu_custom_call.1} parent=5 // pred_check_branch
        %132 = sbr.rel (%p129) target = $region12
      $region11: #{tpu_custom_call.1} parent=5 // pred_region
        %s133 = ssub.s32 %s20, 1
        // Predicated region
        $region13: #{tpu_custom_call.1} parent=11 // pred_check
          %p134 = pneg %p67
        $region14: #{tpu_custom_call.1} parent=11 // pred_check_branch
          %136 = sbr.rel (%p134) target = $region16
        $region15: #{tpu_custom_call.1} parent=11 // pred_region
          %s138 = ssub.s32 2048, 2048
          %139 = vsyncadd [#allocation6], %s138
          %s140 = sshll.u32 [#allocation5], 4
          %s141 = int_to_ptr.vmem [resolvable:$true] %s140
          %146 = dma.hbm_to_vmem [thread:$0]  %s1, 2048, %s141, [#allocation6], 64, 64, 4
        $region16: #{tpu_custom_call.1} parent=11 // pred_fallthru
          _
      $region12: #{tpu_custom_call.1} parent=5 // pred_fallthru
        _
      %p147 = scmp.lt.s32.totalorder %s20, 2
      // Predicated region
      $region17: #{tpu_custom_call.1} parent=5 // pred_check
        %p148 = pneg %p147
      $region18: #{tpu_custom_call.1} parent=5 // pred_check_branch
        %150 = sbr.rel (%p148) target = $region20
      $region19: #{tpu_custom_call.1} parent=5 // pred_region
        // Predicated region
        $region21: #{tpu_custom_call.1} parent=19 // pred_check
          %p151 = pneg %p40
        $region22: #{tpu_custom_call.1} parent=19 // pred_check_branch
          %153 = sbr.rel (%p151) target = $region24
        $region23: #{tpu_custom_call.1} parent=19 // pred_region
          %s154 = sand.u32 %s30, 1
          %s155 = scalar_lea.sflag [#allocation3], %s154
          %s156 = sand.u32 %s30, 1
          %s157 = smul.addr %s156, 16
          %s158 = scalar_lea.vmem [#allocation2], %s157
          %s159 = smul.u32 2, %s20
          %s161 = ssub.s32 256, 256
          %162 = vsyncadd %s155, %s161
          %s163 = smul.addr %s159, 2
          %s164 = smul.addr %s163, 64
          %s165 = scalar_lea.hbm %s0, %s164
          %s166 = sshll.u32 %s158, 4
          %s167 = int_to_ptr.vmem [resolvable:$true] %s166
          %172 = dma.hbm_to_vmem [thread:$0]  %s165, 256, %s167, %s155, 128, 128, 8
        $region24: #{tpu_custom_call.1} parent=19 // pred_fallthru
          _
      $region20: #{tpu_custom_call.1} parent=5 // pred_fallthru
        _
      %p173 = scmp.le.s32.totalorder 1, %s20
      %p174 = scmp.lt.s32.totalorder %s20, 3
      %p175 = pnand %p173, %p174
      %p176 = pneg %p175
      // Predicated region
      $region25: #{tpu_custom_call.1} parent=5 // pred_check
        _
      $region26: #{tpu_custom_call.1} parent=5 // pred_check_branch
        %178 = sbr.rel (%p175) target = $region28
      $region27: #{tpu_custom_call.1} parent=5 // pred_region
        %s179 = ssub.s32 %s20, 1
        %s180 = sand.u32 %s33, 1
        %s181 = scalar_lea.sflag [#allocation3], %s180
        %s182 = sand.u32 %s33, 1
        %s183 = smul.addr %s182, 16
        %s184 = scalar_lea.vmem [#allocation2], %s183
        // Predicated region
        $region29: #{tpu_custom_call.1} parent=27 // pred_check
          %p185 = pneg %p46
        $region30: #{tpu_custom_call.1} parent=27 // pred_check_branch
          %187 = sbr.rel (%p185) target = $region32
        $region31: #{tpu_custom_call.1} parent=27 // pred_region
          %188 = dma.done %s181, 256
        $region32: #{tpu_custom_call.1} parent=27 // pred_fallthru
          _
        // Predicated region
        $region33: #{tpu_custom_call.1} parent=27 // pred_check
          %p189 = pneg %p67
        $region34: #{tpu_custom_call.1} parent=27 // pred_check_branch
          %191 = sbr.rel (%p189) target = $region36
        $region35: #{tpu_custom_call.1} parent=27 // pred_region
          %192 = dma.done [#allocation6], 2048
        $region36: #{tpu_custom_call.1} parent=27 // pred_fallthru
          _
        %s193 = sand.u32 %s33, 1
        %s194 = scalar_lea.sflag [#allocation3], %s193
        %s195 = sand.u32 %s33, 1
        %s196 = smul.addr %s195, 16
        %s197 = scalar_lea.vmem [#allocation2], %s196
        %p198 = pneg %p46
        %p199 = pneg %p43
        %p200 = pneg %p67
        %p201 = pneg %p64
        %p202 = pneg %p93
        %p203 = pneg %p90
        %s204 = sand.u32 %s80, 1
        %s205 = scalar_lea.sflag [#allocation4], %s204
        %s206 = sand.u32 %s80, 1
        %s207 = smul.addr %s206, 16
        %s208 = scalar_lea.vmem [#allocation7], %s207
        %p209 = pneg %p119
        %p210 = pneg %p116
        %s211 = sand.u32 %s106, 1
        %s212 = scalar_lea.sflag [#allocation9], %s211
        %s213 = sand.u32 %s106, 1
        %s214 = smul.addr %s213, 2
        %s215 = scalar_lea.vmem [#allocation8], %s214
        %s216 = smul.u32 2, %s25
        %s217 = smul.u32 2, %s25
        %v219 = vld [vmem:[%s184] sm:$0xff]
        %v220 = vld [vmem:[%s184 + $0x8] sm:$0xff]
        %v221 = vld [vmem:[#allocation5] sm:$0xf]
        %v222 = vld [vmem:[#allocation5 + $0x4] sm:$0xf]
        %v223 = vld [vmem:[#allocation5 + $0x8] sm:$0xf]
        %v224 = vld [vmem:[#allocation5 + $0xc] sm:$0xf]
        %v225 = vld [vmem:[#allocation5 + $0x10] sm:$0xf]
        %v226 = vld [vmem:[#allocation5 + $0x14] sm:$0xf]
        %v227 = vld [vmem:[#allocation5 + $0x18] sm:$0xf]
        %v228 = vld [vmem:[#allocation5 + $0x1c] sm:$0xf]
        %v229 = vld [vmem:[#allocation5 + $0x20] sm:$0xf]
        %v230 = vld [vmem:[#allocation5 + $0x24] sm:$0xf]
        %v231 = vld [vmem:[#allocation5 + $0x28] sm:$0xf]
        %v232 = vld [vmem:[#allocation5 + $0x2c] sm:$0xf]
        %v233 = vld [vmem:[#allocation5 + $0x30] sm:$0xf]
        %v234 = vld [vmem:[#allocation5 + $0x34] sm:$0xf]
        %v235 = vld [vmem:[#allocation5 + $0x38] sm:$0xf]
        %v236 = vld [vmem:[#allocation5 + $0x3c] sm:$0xf]
        %v237 = vld [vmem:[#allocation5 + $0x40] sm:$0xf]
        %v238 = vld [vmem:[#allocation5 + $0x44] sm:$0xf]
        %v239 = vld [vmem:[#allocation5 + $0x48] sm:$0xf]
        %v240 = vld [vmem:[#allocation5 + $0x4c] sm:$0xf]
        %v241 = vld [vmem:[#allocation5 + $0x50] sm:$0xf]
        %v242 = vld [vmem:[#allocation5 + $0x54] sm:$0xf]
        %v243 = vld [vmem:[#allocation5 + $0x58] sm:$0xf]
        %v244 = vld [vmem:[#allocation5 + $0x5c] sm:$0xf]
        %v245 = vld [vmem:[#allocation5 + $0x60] sm:$0xf]
        %v246 = vld [vmem:[#allocation5 + $0x64] sm:$0xf]
        %v247 = vld [vmem:[#allocation5 + $0x68] sm:$0xf]
        %v248 = vld [vmem:[#allocation5 + $0x6c] sm:$0xf]
        %v249 = vld [vmem:[#allocation5 + $0x70] sm:$0xf]
        %v250 = vld [vmem:[#allocation5 + $0x74] sm:$0xf]
        %v251 = vld [vmem:[#allocation5 + $0x78] sm:$0xf]
        %v252 = vld [vmem:[#allocation5 + $0x7c] sm:$0xf]
        %v255 = vunpack.c.l.b16 %v219
        %v256 = vunpack.c.h.b16 %v219
        %v257 = vunpack.c.l.b16 %v220
        %v258 = vunpack.c.h.b16 %v220
        %v259 = vpack.c.b16 %v257, %v255
        %v260 = vpack.c.b16 %v258, %v256
        %v295 = vunpack.c.l.b16 %v221
        %v296 = vunpack.c.l.b16 %v222
        %v297 = vunpack.c.l.b16 %v223
        %v298 = vunpack.c.l.b16 %v224
        %v299 = vunpack.c.l.b16 %v225
        %v300 = vunpack.c.l.b16 %v226
        %v301 = vunpack.c.l.b16 %v227
        %v302 = vunpack.c.l.b16 %v228
        %v303 = vunpack.c.l.b16 %v229
        %v304 = vunpack.c.l.b16 %v230
        %v305 = vunpack.c.l.b16 %v231
        %v306 = vunpack.c.l.b16 %v232
        %v307 = vunpack.c.l.b16 %v233
        %v308 = vunpack.c.l.b16 %v234
        %v309 = vunpack.c.l.b16 %v235
        %v310 = vunpack.c.l.b16 %v236
        %v311 = vunpack.c.l.b16 %v237
        %v312 = vunpack.c.l.b16 %v238
        %v313 = vunpack.c.l.b16 %v239
        %v314 = vunpack.c.l.b16 %v240
        %v315 = vunpack.c.l.b16 %v241
        %v316 = vunpack.c.l.b16 %v242
        %v317 = vunpack.c.l.b16 %v243
        %v318 = vunpack.c.l.b16 %v244
        %v319 = vunpack.c.l.b16 %v245
        %v320 = vunpack.c.l.b16 %v246
        %v321 = vunpack.c.l.b16 %v247
        %v322 = vunpack.c.l.b16 %v248
        %v323 = vunpack.c.l.b16 %v249
        %v324 = vunpack.c.l.b16 %v250
        %v325 = vunpack.c.l.b16 %v251
        %v326 = vunpack.c.l.b16 %v252
        %v327 = vpack.c.b16 %v296, %v295
        %v328 = vpack.c.b16 %v298, %v297
        %v329 = vpack.c.b16 %v300, %v299
        %v330 = vpack.c.b16 %v302, %v301
        %v331 = vpack.c.b16 %v304, %v303
        %v332 = vpack.c.b16 %v306, %v305
        %v333 = vpack.c.b16 %v308, %v307
        %v334 = vpack.c.b16 %v310, %v309
        %v335 = vpack.c.b16 %v312, %v311
        %v336 = vpack.c.b16 %v314, %v313
        %v337 = vpack.c.b16 %v316, %v315
        %v338 = vpack.c.b16 %v318, %v317
        %v339 = vpack.c.b16 %v320, %v319
        %v340 = vpack.c.b16 %v322, %v321
        %v341 = vpack.c.b16 %v324, %v323
        %v342 = vpack.c.b16 %v326, %v325
        %359 = vmatprep.subr.bf16.mxu0 0
        %360 = vmatpush1.bf16.msra.mxu0 %v327
        %361 = vmatprep.subr.bf16.mxu0 0
        %362 = vmatpush1.bf16.msra.mxu0 %v328
        %363 = vmatprep.subr.bf16.mxu0 0
        %364 = vmatpush1.bf16.msra.mxu0 %v329
        %365 = vmatprep.subr.bf16.mxu0 0
        %366 = vmatpush1.bf16.msra.mxu0 %v330
        %367 = vmatprep.subr.bf16.mxu0 0
        %368 = vmatpush1.bf16.msra.mxu0 %v331
        %369 = vmatprep.subr.bf16.mxu0 0
        %370 = vmatpush1.bf16.msra.mxu0 %v332
        %371 = vmatprep.subr.bf16.mxu0 0
        %372 = vmatpush1.bf16.msra.mxu0 %v333
        %373 = vmatprep.subr.bf16.mxu0 0
        %374 = vmatpush1.bf16.msra.mxu0 %v334
        %375 = vmatprep.subr.bf16.mxu0 0
        %376 = vmatpush1.bf16.msra.mxu0 %v335
        %377 = vmatprep.subr.bf16.mxu0 0
        %378 = vmatpush1.bf16.msra.mxu0 %v336
        %379 = vmatprep.subr.bf16.mxu0 0
        %380 = vmatpush1.bf16.msra.mxu0 %v337
        %381 = vmatprep.subr.bf16.mxu0 0
        %382 = vmatpush1.bf16.msra.mxu0 %v338
        %383 = vmatprep.subr.bf16.mxu0 0
        %384 = vmatpush1.bf16.msra.mxu0 %v339
        %385 = vmatprep.subr.bf16.mxu0 0
        %386 = vmatpush1.bf16.msra.mxu0 %v340
        %387 = vmatprep.subr.bf16.mxu0 0
        %388 = vmatpush1.bf16.msra.mxu0 %v341
        %389 = vmatprep.subr.bf16.mxu0 0
        %390 = vmatpush1.bf16.msra.mxu0 %v342
        %391 = vmatprep.mubr.bf16.mxu0 %v260
        %392 = vmatmul.mubr.bf16.gmra.mrb[0].mxu0 %v259
        %v393 = vpop.f32.mrb[0].mxu0
        %v394 = vadd.f32 0.0, %v393
        %v395 = vpop.f32.mrb[0].mxu0
        %v396 = vpop.f32.mrb[0].mxu0
        %v397 = vadd.f32 0.0, %v396
        %v398 = vpop.f32.mrb[0].mxu0
        %399 = vdwg.mxu0
        %400 = vst [vmem:[%s208] sm:$0xff] %v394
        %401 = vst [vmem:[%s208 + $0x8] sm:$0xff] %v397
        %v402 = vadd.f32 %v394, %v397
        %v403 = vrot.slane %v402, 4
        %v404 = vadd.f32 %v402, %v403
        %v405 = vrot.slane %v404, 2
        %v406 = vadd.f32 %v404, %v405
        %v407 = vrot.slane %v406, 1
        %v408 = vadd.f32 %v406, %v407
        %v409 = vmul.f32 %v394, %v394
        %v410 = vmul.f32 %v397, %v397
        %v411 = vadd.f32 %v409, %v410
        %v412 = vrot.slane %v411, 4
        %v413 = vadd.f32 %v411, %v412
        %v414 = vrot.slane %v413, 2
        %v415 = vadd.f32 %v413, %v414
        %v416 = vrot.slane %v415, 1
        %v417 = vadd.f32 %v415, %v416
        %vm418 = vcmask 1040384
        %v419 = vsel %vm418, %v408, %v417
        %420 = vst [vmem:[%s215] sm:$0x3] %v419
        %s421 = sand.u32 %s80, 1
        %s422 = scalar_lea.sflag [#allocation4], %s421
        %s423 = sand.u32 %s80, 1
        %s424 = smul.addr %s423, 16
        %s425 = scalar_lea.vmem [#allocation7], %s424
        %s426 = sand.u32 %s106, 1
        %s427 = scalar_lea.sflag [#allocation9], %s426
        %s428 = sand.u32 %s106, 1
        %s429 = smul.addr %s428, 2
        %s430 = scalar_lea.vmem [#allocation8], %s429
        // Predicated region
        $region37: #{tpu_custom_call.1} parent=27 // pred_check
          %p431 = pneg %p90
        $region38: #{tpu_custom_call.1} parent=27 // pred_check_branch
          %433 = sbr.rel (%p431) target = $region40
        $region39: #{tpu_custom_call.1} parent=27 // pred_region
          %s434 = smul.u32 2, %s25
          %s436 = ssub.s32 256, 256
          %437 = vsyncadd %s422, %s436
          %s438 = smul.addr %s434, 128
          %s439 = scalar_lea.hbm %s2, %s438
          %s440 = sshll.u32 %s425, 4
          %s441 = int_to_ptr.vmem [resolvable:$true] %s440
          %446 = dma.vmem_to_hbm [thread:$0]  %s441, 256, %s439, %s422, 128, 128, 8
        $region40: #{tpu_custom_call.1} parent=27 // pred_fallthru
          _
        // Predicated region
        $region41: #{tpu_custom_call.1} parent=27 // pred_check
          %p447 = pneg %p116
        $region42: #{tpu_custom_call.1} parent=27 // pred_check_branch
          %449 = sbr.rel (%p447) target = $region44
        $region43: #{tpu_custom_call.1} parent=27 // pred_region
          %s451 = ssub.s32 32, 32
          %452 = vsyncadd %s427, %s451
          %s453 = smul.addr %s25, 32
          %s454 = scalar_lea.hbm %s3, %s453
          %s456 = sshll.u32 %s430, 4
          %s457 = int_to_ptr.vmem [resolvable:$true] %s456
          %459 = dma.vmem_to_hbm [thread:$0]  %s457, 32, %s454, %s427
        $region44: #{tpu_custom_call.1} parent=27 // pred_fallthru
          _
      $region28: #{tpu_custom_call.1} parent=5 // pred_fallthru
        _
      %p460 = scmp.le.s32.totalorder 2, %s20
      // Predicated region
      $region45: #{tpu_custom_call.1} parent=5 // pred_check
        %p461 = pneg %p460
      $region46: #{tpu_custom_call.1} parent=5 // pred_check_branch
        %463 = sbr.rel (%p461) target = $region48
      $region47: #{tpu_custom_call.1} parent=5 // pred_region
        %s464 = ssub.s32 %s20, 2
        // Predicated region
        $region49: #{tpu_custom_call.1} parent=47 // pred_check
          %p465 = pneg %p96
        $region50: #{tpu_custom_call.1} parent=47 // pred_check_branch
          %467 = sbr.rel (%p465) target = $region52
        $region51: #{tpu_custom_call.1} parent=47 // pred_region
          %s468 = sand.u32 %s81, 1
          %s469 = scalar_lea.sflag [#allocation4], %s468
          %s470 = sand.u32 %s81, 1
          %s471 = smul.addr %s470, 16
          %s472 = scalar_lea.vmem [#allocation7], %s471
          %473 = dma.done %s469, 256
        $region52: #{tpu_custom_call.1} parent=47 // pred_fallthru
          _
        // Predicated region
        $region53: #{tpu_custom_call.1} parent=47 // pred_check
          %p474 = pneg %p122
        $region54: #{tpu_custom_call.1} parent=47 // pred_check_branch
          %476 = sbr.rel (%p474) target = $region56
        $region55: #{tpu_custom_call.1} parent=47 // pred_region
          %s477 = sand.u32 %s107, 1
          %s478 = scalar_lea.sflag [#allocation9], %s477
          %s479 = sand.u32 %s107, 1
          %s480 = smul.addr %s479, 2
          %s481 = scalar_lea.vmem [#allocation8], %s480
          %482 = dma.done %s478, 32
        $region56: #{tpu_custom_call.1} parent=47 // pred_fallthru
          _
      $region48: #{tpu_custom_call.1} parent=5 // pred_fallthru
        _
    $region6: #{tpu_custom_call.1} parent=1 // loop_footer
      %s24 = sadd.s32 1, %s20
    $region7: #{tpu_custom_call.1} parent=1 // loop_footer_branch
      %19 = sbr.rel target = $region3
    $region8: #{tpu_custom_call.1} parent=1 // loop_exit
      _
    %483 = vsyncpa [#allocation3], 1
    %s484 = scalar_lea.sflag [#allocation3], 1
    %485 = vsyncpa %s484, 1
    %486 = vsyncpa [#allocation6], 1
    %487 = vsyncpa [#allocation4], 1
    %s488 = scalar_lea.sflag [#allocation4], 1
    %489 = vsyncpa %s488, 1
    %490 = vsyncpa [#allocation9], 1
    %s491 = scalar_lea.sflag [#allocation9], 1
    %492 = vsyncpa %s491, 1

</llo_original>
